<compile_context>
chip_gen: v7x
topology: tpu7x:2x2x1
jax: 0.10.0
libtpu: 0.0.40
codegen_flags: <defaults>
</compile_context>

<pallas_src>
import jax
import jax.numpy as jnp
from jax.experimental import pallas as pl
from jax.experimental.pallas import tpu as pltpu

NEG_SLOPE = 0.01  # nn.LeakyReLU() default negative_slope


def _round_up(x, m):
    return (x + m - 1) // m * m


def _resblock_kernel(x_ref, w1_ref, w2_ref, norm_ref, mask_ref, out_ref):
    # x_ref   : (C_pad, Bt*L_pad)  current batch tile, batch segments along lanes
    # w1_ref  : (C_pad, 3*C_pad)   fused conv1 taps: [o, k*C_pad + i] = w1[o, i, k]
    # w2_ref  : (C_pad, 3*C_pad)   fused conv2 taps
    # norm_ref: (C_pad, Bt*L_pad)  channel-norm addend (identical for every tile)
    # mask_ref: (1, Bt*L_pad)      1.0 at positions l < L inside each L_pad segment
    # out_ref : (C_pad, Bt*L_pad)
    lanes = x_ref.shape[1]
    mask = mask_ref[...]

    def conv_lrelu(v, w):
        # Stack the three shifted copies along the contraction axis -> single
        # (C_pad, 3*C_pad) @ (3*C_pad, lanes) MXU dot instead of 3 small dots.
        #   roll(v, 1)         -> v[:, l-1]  (tap k=0)
        #   v                  -> v[:, l]    (tap k=1)
        #   roll(v, lanes - 1) -> v[:, l+1]  (tap k=2; circular roll by -1)
        stacked = jnp.concatenate(
            [pltpu.roll(v, 1, axis=1), v, pltpu.roll(v, lanes - 1, axis=1)],
            axis=0)
        h = jnp.dot(w, stacked, preferred_element_type=jnp.float32)
        return jnp.where(h > 0, h, NEG_SLOPE * h)  # LeakyReLU

    x = x_ref[...].astype(jnp.float32)
    # conv1 + LeakyReLU; the mask reproduces conv2's zero padding (columns >= L of
    # each segment are zeroed) and also kills the lanes wrapped in by the rolls.
    h = conv_lrelu(x, w1_ref[...]) * mask
    y = conv_lrelu(h, w2_ref[...])
    # out[i, j, l] = norm[j, l] + conv_out[i, j, l]  (torch broadcast, needs B == n)
    out_ref[...] = (y + norm_ref[...]).astype(out_ref.dtype)


def _fuse_conv_weight(w, c_pad):
    # w: (C, C, 3) PyTorch Conv1d weight layout (out_c, in_c, k) -> (c_pad, 3*c_pad)
    # with [o, k*c_pad + i] = w[o, i, k]; padded rows/cols are zero.
    c = w.shape[0]
    wp = jnp.zeros((c_pad, c_pad, 3), jnp.float32).at[:c, :c, :].set(
        w.astype(jnp.float32))
    return jnp.transpose(wp, (0, 2, 1)).reshape(c_pad, 3 * c_pad)


def resblock_forward(x, w1, w2, *, target_lanes=2048):
    """x: (B, n, L); w1, w2: (n, n, 3) PyTorch Conv1d weights (out_c, in_c, k)."""
    B, C, L = x.shape
    assert B == C, "ResBlock.forward's broadcast (norm + conv) requires batch == n"

    c_pad = _round_up(max(C, 8), 8)          # f32 sublane granule
    l_pad = _round_up(L + 1, 128)            # lane granule; > L so rolled-in lanes are zero
    bt = max(1, min(B, target_lanes // l_pad))   # batch elements per grid step
    b_pad = _round_up(B, bt)
    lanes = bt * l_pad

    # x flattened batch-major onto the lane axis: (c_pad, b_pad * l_pad)
    xp = jnp.zeros((b_pad, c_pad, l_pad), x.dtype).at[:B, :C, :L].set(x)
    x_flat = jnp.transpose(xp, (1, 0, 2)).reshape(c_pad, b_pad * l_pad)

    # torch.norm(x, dim=1): (B, L) == (n, L); same additive term for every output
    # batch element, so compute it once and keep it resident (tiled to one block).
    xf = x.astype(jnp.float32)
    norm = jnp.sqrt(jnp.sum(xf * xf, axis=1))                       # (B, L)
    norm_pad = jnp.zeros((c_pad, l_pad), jnp.float32).at[:C, :L].set(norm)
    norm_tiled = jnp.tile(norm_pad, (1, bt))                        # (c_pad, lanes)

    # Precomputed 0/1 mask: 1.0 where position < L inside each l_pad segment.
    mask = jnp.tile((jnp.arange(l_pad) < L).astype(jnp.float32), (bt,))[None, :]

    w1f = _fuse_conv_weight(w1, c_pad)
    w2f = _fuse_conv_weight(w2, c_pad)

    out_flat = pl.pallas_call(
        _resblock_kernel,
        out_shape=jax.ShapeDtypeStruct((c_pad, b_pad * l_pad), x.dtype),
        grid_spec=pltpu.PrefetchScalarGridSpec(
            num_scalar_prefetch=0,
            grid=(b_pad // bt,),
            in_specs=[
                pl.BlockSpec((c_pad, lanes), lambda i: (0, i)),      # x tile (pipelined)
                pl.BlockSpec((c_pad, 3 * c_pad), lambda i: (0, 0)),  # conv1 weights (resident)
                pl.BlockSpec((c_pad, 3 * c_pad), lambda i: (0, 0)),  # conv2 weights (resident)
                pl.BlockSpec((c_pad, lanes), lambda i: (0, 0)),      # norm addend (resident)
                pl.BlockSpec((1, lanes), lambda i: (0, 0)),          # padding mask (resident)
            ],
            out_specs=pl.BlockSpec((c_pad, lanes), lambda i: (0, i)),
        ),
        compiler_params=pltpu.CompilerParams(
            dimension_semantics=("parallel",),       # independent batch tiles (v7x: 2 TCs)
            vmem_limit_bytes=32 * 1024 * 1024,
        ),
    )(x_flat, w1f, w2f, norm_tiled, mask)

    # TODO(synk): for large realistic C on v5e/v6e, feed bf16 operands to the fused
    # dots (keep f32 accumulation) to halve HBM traffic; kept f32 at these tiny shapes.

    # (c_pad, b_pad*l_pad) -> (B, C, L)
    out = out_flat.reshape(c_pad, b_pad, l_pad)
    return jnp.transpose(out, (1, 0, 2))[:B, :C, :L]


def _reference(x, w1, w2):
    def conv_lrelu(z, w):
        y = jax.lax.conv_general_dilated(
            z, w, window_strides=(1,), padding=((1, 1),),
            dimension_numbers=("NCH", "OIH", "NCH"))
        return jnp.where(y > 0, y, NEG_SLOPE * y)
    y = conv_lrelu(conv_lrelu(x, w1), w2)
    norm = jnp.sqrt(jnp.sum(x * x, axis=1))   # (B, L)
    return norm + y                           # broadcasts exactly like torch (B == n)


if __name__ == "__main__":
    key = jax.random.PRNGKey(0)
    k1, k2, k3 = jax.random.split(key, 3)

    n = 4                 # ResBlock(n); must equal batch for the module's broadcast
    B, L = n, 16
    x = jax.random.normal(k1, (B, n, L), jnp.float32)
    # nn.Conv1d(n, n, ks=3, bias=False) weight shape: (out_c, in_c, ks)
    w1 = jax.random.normal(k2, (n, n, 3), jnp.float32) * 0.3
    w2 = jax.random.normal(k3, (n, n, 3), jnp.float32) * 0.3

    out = jax.block_until_ready(resblock_forward(x, w1, w2))

    expected = _reference(x, w1, w2)
    assert out.shape == (B, n, L), out.shape
    err = float(jnp.max(jnp.abs(out - expected)))
    assert jnp.allclose(out, expected, atol=1e-4, rtol=1e-4), (
        "max abs err = %f" % err)
    print("KERNEL_OK")
</pallas_src>

<mosaic_0001>
module attributes {stable_mosaic.version = 11 : i64} {
  func.func @_resblock_kernel(%arg0: i32, %arg1: memref<8x512xf32, #tpu.memory_space<vmem>>, %arg2: memref<8x24xf32, #tpu.memory_space<vmem>>, %arg3: memref<8x24xf32, #tpu.memory_space<vmem>>, %arg4: memref<8x512xf32, #tpu.memory_space<vmem>>, %arg5: memref<1x512xf32, #tpu.memory_space<vmem>>, %arg6: memref<8x512xf32, #tpu.memory_space<vmem>>) attributes {dimension_semantics = [#tpu.dimension_semantics<parallel>], iteration_bounds = array<i64: 1>, scalar_prefetch = 0 : i64, scratch_operands = 0 : i64, tpu.core_type = #tpu.core_type<tc>, window_params = [{transform_indices = @transform_0, window_bounds = array<i64: 8, 512>}, {pipeline_mode = #tpu.pipeline_mode<synchronous>, transform_indices = @transform_1, window_bounds = array<i64: 8, 24>}, {pipeline_mode = #tpu.pipeline_mode<synchronous>, transform_indices = @transform_2, window_bounds = array<i64: 8, 24>}, {pipeline_mode = #tpu.pipeline_mode<synchronous>, transform_indices = @transform_3, window_bounds = array<i64: 8, 512>}, {pipeline_mode = #tpu.pipeline_mode<synchronous>, transform_indices = @transform_4, window_bounds = array<i64: 1, 512>}, {transform_indices = @transform_5, window_bounds = array<i64: 8, 512>}]} {
    %c0 = arith.constant 0 : index
    %c0_0 = arith.constant 0 : index
    %0 = vector.load %arg5[%c0, %c0_0] : memref<1x512xf32, #tpu.memory_space<vmem>>, vector<1x512xf32>
    %c0_1 = arith.constant 0 : index
    %c0_2 = arith.constant 0 : index
    %1 = vector.load %arg1[%c0_1, %c0_2] : memref<8x512xf32, #tpu.memory_space<vmem>>, vector<8x512xf32>
    %c0_3 = arith.constant 0 : index
    %c0_4 = arith.constant 0 : index
    %2 = vector.load %arg2[%c0_3, %c0_4] : memref<8x24xf32, #tpu.memory_space<vmem>>, vector<8x24xf32>
    %c1_i32 = arith.constant 1 : i32
    %3 = tpu.dynamic_rotate %1 by %c1_i32 dim 1 : vector<8x512xf32>, i32 -> vector<8x512xf32>
    %c511_i32 = arith.constant 511 : i32
    %4 = tpu.dynamic_rotate %1 by %c511_i32 dim 1 : vector<8x512xf32>, i32 -> vector<8x512xf32>
    %5 = tpu.concatenate %3, %1, %4 in 0 : vector<8x512xf32>, vector<8x512xf32>, vector<8x512xf32> -> vector<24x512xf32>
    %cst = arith.constant dense<0.000000e+00> : vector<8x512xf32>
    %6 = tpu.matmul %2, %5, %cst {dimension_numbers = #tpu.dot_dimension_numbers<[1], [0], [0], [1], [0, 0, 1, 1], [], []>} : vector<8x24xf32>, vector<24x512xf32>, vector<8x512xf32> -> vector<8x512xf32>
    %cst_5 = arith.constant 0.000000e+00 : f32
    %7 = vector.broadcast %cst_5 : f32 to vector<8x512xf32>
    %8 = arith.cmpf ogt, %6, %7 : vector<8x512xf32>
    %cst_6 = arith.constant 0.00999999977 : f32
    %9 = vector.broadcast %cst_6 : f32 to vector<8x512xf32>
    %10 = arith.mulf %9, %6 : vector<8x512xf32>
    %11 = arith.select %8, %6, %10 : vector<8x512xi1>, vector<8x512xf32>
    %12 = vector.broadcast %0 : vector<1x512xf32> to vector<8x512xf32>
    %13 = arith.mulf %11, %12 : vector<8x512xf32>
    %c0_7 = arith.constant 0 : index
    %c0_8 = arith.constant 0 : index
    %14 = vector.load %arg3[%c0_7, %c0_8] : memref<8x24xf32, #tpu.memory_space<vmem>>, vector<8x24xf32>
    %c1_i32_9 = arith.constant 1 : i32
    %15 = tpu.dynamic_rotate %13 by %c1_i32_9 dim 1 : vector<8x512xf32>, i32 -> vector<8x512xf32>
    %c511_i32_10 = arith.constant 511 : i32
    %16 = tpu.dynamic_rotate %13 by %c511_i32_10 dim 1 : vector<8x512xf32>, i32 -> vector<8x512xf32>
    %17 = tpu.concatenate %15, %13, %16 in 0 : vector<8x512xf32>, vector<8x512xf32>, vector<8x512xf32> -> vector<24x512xf32>
    %cst_11 = arith.constant dense<0.000000e+00> : vector<8x512xf32>
    %18 = tpu.matmul %14, %17, %cst_11 {dimension_numbers = #tpu.dot_dimension_numbers<[1], [0], [0], [1], [0, 0, 1, 1], [], []>} : vector<8x24xf32>, vector<24x512xf32>, vector<8x512xf32> -> vector<8x512xf32>
    %cst_12 = arith.constant 0.000000e+00 : f32
    %19 = vector.broadcast %cst_12 : f32 to vector<8x512xf32>
    %20 = arith.cmpf ogt, %18, %19 : vector<8x512xf32>
    %cst_13 = arith.constant 0.00999999977 : f32
    %21 = vector.broadcast %cst_13 : f32 to vector<8x512xf32>
    %22 = arith.mulf %21, %18 : vector<8x512xf32>
    %23 = arith.select %20, %18, %22 : vector<8x512xi1>, vector<8x512xf32>
    %c0_14 = arith.constant 0 : index
    %c0_15 = arith.constant 0 : index
    %24 = vector.load %arg4[%c0_14, %c0_15] : memref<8x512xf32, #tpu.memory_space<vmem>>, vector<8x512xf32>
    %25 = arith.addf %23, %24 : vector<8x512xf32>
    %c0_16 = arith.constant 0 : index
    %c0_17 = arith.constant 0 : index
    %26 = vector.load %arg6[%c0_16, %c0_17] : memref<8x512xf32, #tpu.memory_space<vmem>>, vector<8x512xf32>
    tpu.vector_store %arg6[%c0_16, %c0_17], %25 {strides = array<i32>} : memref<8x512xf32, #tpu.memory_space<vmem>>, vector<8x512xf32>,
    return
  }
  func.func @transform_0(%arg0: i32) -> (i32, i32) {
    %c0_i32 = arith.constant 0 : i32
    %c0_i32_0 = arith.constant 0 : i32
    return %c0_i32, %arg0 : i32, i32
  }
  func.func @transform_1(%arg0: i32) -> (i32, i32) {
    %c0_i32 = arith.constant 0 : i32
    %c0_i32_0 = arith.constant 0 : i32
    %c0_i32_1 = arith.constant 0 : i32
    return %c0_i32, %c0_i32_0 : i32, i32
  }
  func.func @transform_2(%arg0: i32) -> (i32, i32) {
    %c0_i32 = arith.constant 0 : i32
    %c0_i32_0 = arith.constant 0 : i32
    %c0_i32_1 = arith.constant 0 : i32
    return %c0_i32, %c0_i32_0 : i32, i32
  }
  func.func @transform_3(%arg0: i32) -> (i32, i32) {
    %c0_i32 = arith.constant 0 : i32
    %c0_i32_0 = arith.constant 0 : i32
    %c0_i32_1 = arith.constant 0 : i32
    return %c0_i32, %c0_i32_0 : i32, i32
  }
  func.func @transform_4(%arg0: i32) -> (i32, i32) {
    %c0_i32 = arith.constant 0 : i32
    %c0_i32_0 = arith.constant 0 : i32
    %c0_i32_1 = arith.constant 0 : i32
    return %c0_i32, %c0_i32_0 : i32, i32
  }
  func.func @transform_5(%arg0: i32) -> (i32, i32) {
    %c0_i32 = arith.constant 0 : i32
    %c0_i32_0 = arith.constant 0 : i32
    return %c0_i32, %arg0 : i32, i32
  }
}

</mosaic_0001>

<llo_original>
// kernel: tpu_custom_call.1
$region0: #{tpu_custom_call.1}
  #allocation0 [shape = 'u32[]', space=smem, size = 0x4, offset = 0x4, fixed_abs, tag = 'smem constant byte address 0x4 - core index']
  #allocation1 [shape = 'u32[144,128]{1,0:T(1,128)}', space=vmem, size = 0x12000, scoped, tag = 'internal scratch']
  %s0 = inlined_call_operand.hbm [shape: f32[8,512], index: 0, kind: input, shape index: {}]
  %s1 = inlined_call_operand.hbm [shape: f32[8,24], index: 1, kind: input, shape index: {}]
  %s2 = inlined_call_operand.hbm [shape: f32[8,24], index: 2, kind: input, shape index: {}]
  %s3 = inlined_call_operand.hbm [shape: f32[8,512], index: 3, kind: input, shape index: {}]
  %s4 = inlined_call_operand.vmem [shape: f32[1,512], index: 4, kind: input, shape index: {}]
  %s5 = inlined_call_operand.hbm [shape: f32[8,512], index: 5, kind: output, shape index: {}]
  %s6 = sld [smem:[#allocation0]]
  $region46: #{tpu_custom_call.1} parent=0
    _
  %s8 = ssub.s32 1, %s6
  %s9 = scalar_select 0, %s8, %s6
  $region1: #{tpu_custom_call.1} parent=0
    #allocation2 [shape = 'u8[16384]{0}', space=vmem, size = 0x4000, scoped, tag = 'input window, operand 0, single buffered']
    #allocation3 [shape = 's32[1]{0}', space=sflag, size = 0x4, scoped, tag = 'scoped memory for tpu_custom_call.1']
    #allocation4 [shape = 's32[1]{0}', space=sflag, size = 0x4, scoped, tag = 'scoped memory for tpu_custom_call.1']
    #allocation5 [shape = 'u8[4096]{0}', space=vmem, size = 0x1000, scoped, tag = 'input window, operand 1, single buffered']
    #allocation6 [shape = 's32[1]{0}', space=sflag, size = 0x4, scoped, tag = 'scoped memory for tpu_custom_call.1']
    #allocation7 [shape = 'u8[4096]{0}', space=vmem, size = 0x1000, scoped, tag = 'input window, operand 2, single buffered']
    #allocation8 [shape = 'u8[16384]{0}', space=vmem, size = 0x4000, scoped, tag = 'input window, operand 3, single buffered']
    #allocation9 [shape = 's32[1]{0}', space=sflag, size = 0x4, scoped, tag = 'scoped memory for tpu_custom_call.1']
    #allocation10 [shape = 'u8[16384]{0}', space=vmem, size = 0x4000, scoped, tag = 'output window, operand 0, single buffered']
    %10 = vsyncpa [#allocation3], 0
    %11 = vsyncpa [#allocation6], 0
    %12 = vsyncpa [#allocation9], 0
    %13 = vsyncpa [#allocation4], 0
    // Predicated region
    $region2: #{tpu_custom_call.1} parent=1 // pred_check
      _
    $region3: #{tpu_custom_call.1} parent=1 // pred_check_branch
      %15 = sbr.rel (0) target = $region5
    $region4: #{tpu_custom_call.1} parent=1 // pred_region
      %s17 = ssub.s32 512, 512
      %18 = vsyncadd [#allocation3], %s17
      %s20 = sshll.u32 [#allocation2], 4
      %s21 = int_to_ptr.vmem [resolvable:$true] %s20
      %23 = dma.hbm_to_vmem [thread:$0]  %s0, 512, %s21, [#allocation3]
    $region5: #{tpu_custom_call.1} parent=1 // pred_fallthru
      _
    // Predicated region
    $region6: #{tpu_custom_call.1} parent=1 // pred_check
      _
    $region7: #{tpu_custom_call.1} parent=1 // pred_check_branch
      %25 = sbr.rel (0) target = $region9
    $region8: #{tpu_custom_call.1} parent=1 // pred_region
      %s27 = ssub.s32 128, 128
      %28 = vsyncadd [#allocation6], %s27
      %s30 = sshll.u32 [#allocation5], 4
      %s31 = int_to_ptr.vmem [resolvable:$true] %s30
      %33 = dma.hbm_to_vmem [thread:$0]  %s1, 128, %s31, [#allocation6]
    $region9: #{tpu_custom_call.1} parent=1 // pred_fallthru
      _
    // Predicated region
    $region10: #{tpu_custom_call.1} parent=1 // pred_check
      _
    $region11: #{tpu_custom_call.1} parent=1 // pred_check_branch
      %35 = sbr.rel (0) target = $region13
    $region12: #{tpu_custom_call.1} parent=1 // pred_region
      %s37 = ssub.s32 128, 128
      %38 = vsyncadd [#allocation6], %s37
      %s40 = sshll.u32 [#allocation7], 4
      %s41 = int_to_ptr.vmem [resolvable:$true] %s40
      %43 = dma.hbm_to_vmem [thread:$0]  %s2, 128, %s41, [#allocation6]
    $region13: #{tpu_custom_call.1} parent=1 // pred_fallthru
      _
    // Predicated region
    $region14: #{tpu_custom_call.1} parent=1 // pred_check
      _
    $region15: #{tpu_custom_call.1} parent=1 // pred_check_branch
      %45 = sbr.rel (0) target = $region17
    $region16: #{tpu_custom_call.1} parent=1 // pred_region
      %s47 = ssub.s32 512, 512
      %48 = vsyncadd [#allocation9], %s47
      %s50 = sshll.u32 [#allocation8], 4
      %s51 = int_to_ptr.vmem [resolvable:$true] %s50
      %53 = dma.hbm_to_vmem [thread:$0]  %s3, 512, %s51, [#allocation9]
    $region17: #{tpu_custom_call.1} parent=1 // pred_fallthru
      _
    // Predicated region
    $region18: #{tpu_custom_call.1} parent=1 // pred_check
      _
    $region19: #{tpu_custom_call.1} parent=1 // pred_check_branch
      %55 = sbr.rel (0) target = $region21
    $region20: #{tpu_custom_call.1} parent=1 // pred_region
      _
    $region21: #{tpu_custom_call.1} parent=1 // pred_fallthru
      _
    // Predicated region
    $region22: #{tpu_custom_call.1} parent=1 // pred_check
      _
    $region23: #{tpu_custom_call.1} parent=1 // pred_check_branch
      %57 = sbr.rel (0) target = $region25
    $region24: #{tpu_custom_call.1} parent=1 // pred_region
      %58 = dma.done [#allocation3], 512
    $region25: #{tpu_custom_call.1} parent=1 // pred_fallthru
      _
    // Predicated region
    $region26: #{tpu_custom_call.1} parent=1 // pred_check
      _
    $region27: #{tpu_custom_call.1} parent=1 // pred_check_branch
      %60 = sbr.rel (0) target = $region29
    $region28: #{tpu_custom_call.1} parent=1 // pred_region
      %61 = dma.done [#allocation6], 128
    $region29: #{tpu_custom_call.1} parent=1 // pred_fallthru
      _
    // Predicated region
    $region30: #{tpu_custom_call.1} parent=1 // pred_check
      _
    $region31: #{tpu_custom_call.1} parent=1 // pred_check_branch
      %63 = sbr.rel (0) target = $region33
    $region32: #{tpu_custom_call.1} parent=1 // pred_region
      %64 = dma.done [#allocation6], 128
    $region33: #{tpu_custom_call.1} parent=1 // pred_fallthru
      _
    // Predicated region
    $region34: #{tpu_custom_call.1} parent=1 // pred_check
      _
    $region35: #{tpu_custom_call.1} parent=1 // pred_check_branch
      %66 = sbr.rel (0) target = $region37
    $region36: #{tpu_custom_call.1} parent=1 // pred_region
      %67 = dma.done [#allocation9], 512
    $region37: #{tpu_custom_call.1} parent=1 // pred_fallthru
      _
    %v68 = vld [vmem:[%s4] sm:$0xf]
    %v69 = vld [vmem:[#allocation2] sm:$0xff]
    %v70 = vld [vmem:[#allocation2 + $0x8] sm:$0xff]
    %v71 = vld [vmem:[#allocation2 + $0x10] sm:$0xff]
    %v72 = vld [vmem:[#allocation2 + $0x18] sm:$0xff]
    %v73 = vld [vmem:[#allocation5] sm:$0xff]
    %74 = vrot.lane.b32.xlu0 %v69, 1
    %v75 = vpop.permute.xlu0 %74
    %76 = vrot.lane.b32.xlu0 %v70, 1
    %v77 = vpop.permute.xlu0 %76
    %78 = vrot.lane.b32.xlu0 %v71, 1
    %v79 = vpop.permute.xlu0 %78
    %80 = vrot.lane.b32.xlu0 %v72, 1
    %v81 = vpop.permute.xlu0 %80
    %v82 = vlaneseq
    %v83 = vand.u32 %v82, 127
    %vm84 = vcmp.lt.s32.totalorder %v83, 1
    %v85 = vsel %vm84, %v79, %v81
    %v86 = vsel %vm84, %v77, %v79
    %v87 = vsel %vm84, %v75, %v77
    %v88 = vsel %vm84, %v81, %v75
    %89 = vrot.lane.b32.xlu0 %v69, 127
    %v90 = vpop.permute.xlu0 %89
    %91 = vrot.lane.b32.xlu0 %v70, 127
    %v92 = vpop.permute.xlu0 %91
    %93 = vrot.lane.b32.xlu0 %v71, 127
    %v94 = vpop.permute.xlu0 %93
    %95 = vrot.lane.b32.xlu0 %v72, 127
    %v96 = vpop.permute.xlu0 %95
    %vm97 = vcmp.lt.s32.totalorder %v83, 127
    %v98 = vsel %vm97, %v94, %v96
    %v99 = vsel %vm97, %v92, %v94
    %v100 = vsel %vm97, %v90, %v92
    %v101 = vsel %vm97, %v96, %v90
    %vm102 = vcmask 195584
    %v104 = vsel %vm102, %v73, 0
    %106 = vmatprep.subr.mxu0 %v87
    %107 = vmatpush1.msra.mxu0 %v88
    %108 = vmatprep.subr.mxu0 %v70
    %109 = vmatpush1.msra.mxu0 %v69
    %110 = vmatprep.subr.mxu0 %v99
    %111 = vmatpush1.msra.mxu0 %v100
    %112 = vmatprep.subr.mxu0 0.0
    %113 = vmatpush1.msra.mxu0 0.0
    %114 = vmatprep.subr.mxu0 0.0
    %115 = vmatpush1.msra.mxu0 0.0
    %116 = vmatprep.subr.mxu0 0.0
    %117 = vmatpush1.msra.mxu0 0.0
    %118 = vmatprep.subr.mxu0 0.0
    %119 = vmatpush1.msra.mxu0 0.0
    %120 = vmatprep.subr.mxu0 0.0
    %121 = vmatpush1.msra.mxu0 0.0
    %122 = vmatprep.subr.mxu0 0.0
    %123 = vmatpush1.msra.mxu0 0.0
    %124 = vmatprep.subr.mxu0 0.0
    %125 = vmatpush1.msra.mxu0 0.0
    %126 = vmatprep.subr.mxu0 0.0
    %127 = vmatpush1.msra.mxu0 0.0
    %128 = vmatprep.subr.mxu0 0.0
    %129 = vmatpush1.msra.mxu0 0.0
    %130 = vmatprep.subr.mxu0 0.0
    %131 = vmatpush1.msra.mxu0 0.0
    %132 = vmatprep.subr.mxu0 0.0
    %133 = vmatpush1.msra.mxu0 0.0
    %134 = vmatprep.subr.mxu0 0.0
    %135 = vmatpush1.msra.mxu0 0.0
    %136 = vmatprep.subr.mxu0 0.0
    %137 = vmatpush1.msra.mxu0 0.0
    %138 = vmatprep.subr.mxu0 0.0
    %139 = vmatpush1.msra.mxu0 0.0
    %140 = vmatprep.subr.mxu0 0.0
    %141 = vmatpush1.msra.mxu0 0.0
    %142 = vmatprep.subr.mxu0 0.0
    %143 = vmatpush1.msra.mxu0 0.0
    %144 = vmatprep.subr.mxu0 0.0
    %145 = vmatpush1.msra.mxu0 0.0
    %146 = vmatprep.subr.mxu0 0.0
    %147 = vmatpush1.msra.mxu0 0.0
    %148 = vmatprep.subr.mxu0 0.0
    %149 = vmatpush1.msra.mxu0 0.0
    %150 = vmatprep.subr.mxu0 0.0
    %151 = vmatpush1.msra.mxu0 0.0
    %152 = vmatprep.subr.mxu0 0.0
    %153 = vmatpush1.msra.mxu0 0.0
    %154 = vmatprep.subr.mxu0 0.0
    %155 = vmatpush1.msra.mxu0 0.0
    %156 = vmatprep.subr.mxu0 0.0
    %157 = vmatpush1.msra.mxu0 0.0
    %158 = vmatprep.subr.mxu0 0.0
    %159 = vmatpush1.msra.mxu0 0.0
    %160 = vmatprep.subr.mxu0 0.0
    %161 = vmatpush1.msra.mxu0 0.0
    %162 = vmatprep.subr.mxu0 0.0
    %163 = vmatpush1.msra.mxu0 0.0
    %164 = vmatprep.subr.mxu0 0.0
    %165 = vmatpush1.msra.mxu0 0.0
    %166 = vmatprep.subr.mxu0 0.0
    %167 = vmatpush1.msra.mxu0 0.0
    %168 = vmatprep.subr.mxu0 0.0
    %169 = vmatpush1.msra.mxu0 0.0
    %170 = vmatprep.mubr.f32.mxu0 0.0
    %171 = vmatmul.mubr.f32.gmra.mrb[0].mxu0 %v104
    %v172 = vpop.f32.mrb[0].mxu0
    %v173 = vadd.f32 0.0, %v172
    %v174 = vpop.f32.mrb[0].mxu0
    %v175 = vadd.f32 0.0, %v174
    %176 = vdwg.mxu0
    %177 = vmatprep.subr.mxu0 %v85
    %178 = vmatpush1.msra.mxu0 %v86
    %179 = vmatprep.subr.mxu0 %v72
    %180 = vmatpush1.msra.mxu0 %v71
    %181 = vmatprep.subr.mxu0 %v101
    %182 = vmatpush1.msra.mxu0 %v98
    %183 = vmatprep.subr.mxu0 0.0
    %184 = vmatpush1.msra.mxu0 0.0
    %185 = vmatprep.subr.mxu0 0.0
    %186 = vmatpush1.msra.mxu0 0.0
    %187 = vmatprep.subr.mxu0 0.0
    %188 = vmatpush1.msra.mxu0 0.0
    %189 = vmatprep.subr.mxu0 0.0
    %190 = vmatpush1.msra.mxu0 0.0
    %191 = vmatprep.subr.mxu0 0.0
    %192 = vmatpush1.msra.mxu0 0.0
    %193 = vmatprep.subr.mxu0 0.0
    %194 = vmatpush1.msra.mxu0 0.0
    %195 = vmatprep.subr.mxu0 0.0
    %196 = vmatpush1.msra.mxu0 0.0
    %197 = vmatprep.subr.mxu0 0.0
    %198 = vmatpush1.msra.mxu0 0.0
    %199 = vmatprep.subr.mxu0 0.0
    %200 = vmatpush1.msra.mxu0 0.0
    %201 = vmatprep.subr.mxu0 0.0
    %202 = vmatpush1.msra.mxu0 0.0
    %203 = vmatprep.subr.mxu0 0.0
    %204 = vmatpush1.msra.mxu0 0.0
    %205 = vmatprep.subr.mxu0 0.0
    %206 = vmatpush1.msra.mxu0 0.0
    %207 = vmatprep.subr.mxu0 0.0
    %208 = vmatpush1.msra.mxu0 0.0
    %209 = vmatprep.subr.mxu0 0.0
    %210 = vmatpush1.msra.mxu0 0.0
    %211 = vmatprep.subr.mxu0 0.0
    %212 = vmatpush1.msra.mxu0 0.0
    %213 = vmatprep.subr.mxu0 0.0
    %214 = vmatpush1.msra.mxu0 0.0
    %215 = vmatprep.subr.mxu0 0.0
    %216 = vmatpush1.msra.mxu0 0.0
    %217 = vmatprep.subr.mxu0 0.0
    %218 = vmatpush1.msra.mxu0 0.0
    %219 = vmatprep.subr.mxu0 0.0
    %220 = vmatpush1.msra.mxu0 0.0
    %221 = vmatprep.subr.mxu0 0.0
    %222 = vmatpush1.msra.mxu0 0.0
    %223 = vmatprep.subr.mxu0 0.0
    %224 = vmatpush1.msra.mxu0 0.0
    %225 = vmatprep.subr.mxu0 0.0
    %226 = vmatpush1.msra.mxu0 0.0
    %227 = vmatprep.subr.mxu0 0.0
    %228 = vmatpush1.msra.mxu0 0.0
    %229 = vmatprep.subr.mxu0 0.0
    %230 = vmatpush1.msra.mxu0 0.0
    %231 = vmatprep.subr.mxu0 0.0
    %232 = vmatpush1.msra.mxu0 0.0
    %233 = vmatprep.subr.mxu0 0.0
    %234 = vmatpush1.msra.mxu0 0.0
    %235 = vmatprep.subr.mxu0 0.0
    %236 = vmatpush1.msra.mxu0 0.0
    %237 = vmatprep.subr.mxu0 0.0
    %238 = vmatpush1.msra.mxu0 0.0
    %239 = vmatprep.subr.mxu0 0.0
    %240 = vmatpush1.msra.mxu0 0.0
    %241 = vmatprep.mubr.f32.mxu0 0.0
    %242 = vmatmul.mubr.f32.gmra.mrb[0].mxu0 %v104
    %v243 = vpop.f32.mrb[0].mxu0
    %v244 = vadd.f32 0.0, %v243
    %v245 = vpop.f32.mrb[0].mxu0
    %v246 = vadd.f32 0.0, %v245
    %247 = vdwg.mxu0
    %vm248 = vcmp.gt.f32.partialorder %v173, 0.0
    %vm249 = vcmp.gt.f32.partialorder %v175, 0.0
    %vm250 = vcmp.gt.f32.partialorder %v244, 0.0
    %vm251 = vcmp.gt.f32.partialorder %v246, 0.0
    %v252 = vmul.f32 %v173, 0.01
    %v253 = vmul.f32 %v175, 0.01
    %v254 = vmul.f32 %v244, 0.01
    %v255 = vmul.f32 %v246, 0.01
    %v256 = vsel %vm248, %v173, %v252
    %v257 = vsel %vm249, %v175, %v253
    %v258 = vsel %vm250, %v244, %v254
    %v259 = vsel %vm251, %v246, %v255
    %v261 = vlaneseq
    %v262 = vshrl.u32 %v261, 7
    %v263 = vsub.s32 0, %v262
    %v264 = vrot.slane %v68, %v263
    %v265 = vlaneseq
    %v266 = vshrl.u32 %v265, 7
    %v267 = vsub.s32 1, %v266
    %v268 = vrot.slane %v68, %v267
    %v269 = vlaneseq
    %v270 = vshrl.u32 %v269, 7
    %v271 = vsub.s32 2, %v270
    %v272 = vrot.slane %v68, %v271
    %v273 = vlaneseq
    %v274 = vshrl.u32 %v273, 7
    %v275 = vsub.s32 3, %v274
    %v276 = vrot.slane %v68, %v275
    %v281 = vmul.f32 %v256, %v264
    %v282 = vmul.f32 %v257, %v268
    %v283 = vmul.f32 %v258, %v272
    %v284 = vmul.f32 %v259, %v276
    %v285 = vld [vmem:[#allocation7] sm:$0xff]
    %286 = vrot.lane.b32.xlu0 %v281, 1
    %v287 = vpop.permute.xlu0 %286
    %288 = vrot.lane.b32.xlu0 %v282, 1
    %v289 = vpop.permute.xlu0 %288
    %290 = vrot.lane.b32.xlu0 %v283, 1
    %v291 = vpop.permute.xlu0 %290
    %292 = vrot.lane.b32.xlu0 %v284, 1
    %v293 = vpop.permute.xlu0 %292
    %v294 = vsel %vm84, %v291, %v293
    %v295 = vsel %vm84, %v289, %v291
    %v296 = vsel %vm84, %v287, %v289
    %v297 = vsel %vm84, %v293, %v287
    %298 = vrot.lane.b32.xlu0 %v281, 127
    %v299 = vpop.permute.xlu0 %298
    %300 = vrot.lane.b32.xlu0 %v282, 127
    %v301 = vpop.permute.xlu0 %300
    %302 = vrot.lane.b32.xlu0 %v283, 127
    %v303 = vpop.permute.xlu0 %302
    %304 = vrot.lane.b32.xlu0 %v284, 127
    %v305 = vpop.permute.xlu0 %304
    %v306 = vsel %vm97, %v303, %v305
    %v307 = vsel %vm97, %v301, %v303
    %v308 = vsel %vm97, %v299, %v301
    %v309 = vsel %vm97, %v305, %v299
    %v311 = vsel %vm102, %v285, 0
    %313 = vmatprep.subr.mxu0 %v296
    %314 = vmatpush1.msra.mxu0 %v297
    %315 = vmatprep.subr.mxu0 %v282
    %316 = vmatpush1.msra.mxu0 %v281
    %317 = vmatprep.subr.mxu0 %v307
    %318 = vmatpush1.msra.mxu0 %v308
    %319 = vmatprep.subr.mxu0 0.0
    %320 = vmatpush1.msra.mxu0 0.0
    %321 = vmatprep.subr.mxu0 0.0
    %322 = vmatpush1.msra.mxu0 0.0
    %323 = vmatprep.subr.mxu0 0.0
    %324 = vmatpush1.msra.mxu0 0.0
    %325 = vmatprep.subr.mxu0 0.0
    %326 = vmatpush1.msra.mxu0 0.0
    %327 = vmatprep.subr.mxu0 0.0
    %328 = vmatpush1.msra.mxu0 0.0
    %329 = vmatprep.subr.mxu0 0.0
    %330 = vmatpush1.msra.mxu0 0.0
    %331 = vmatprep.subr.mxu0 0.0
    %332 = vmatpush1.msra.mxu0 0.0
    %333 = vmatprep.subr.mxu0 0.0
    %334 = vmatpush1.msra.mxu0 0.0
    %335 = vmatprep.subr.mxu0 0.0
    %336 = vmatpush1.msra.mxu0 0.0
    %337 = vmatprep.subr.mxu0 0.0
    %338 = vmatpush1.msra.mxu0 0.0
    %339 = vmatprep.subr.mxu0 0.0
    %340 = vmatpush1.msra.mxu0 0.0
    %341 = vmatprep.subr.mxu0 0.0
    %342 = vmatpush1.msra.mxu0 0.0
    %343 = vmatprep.subr.mxu0 0.0
    %344 = vmatpush1.msra.mxu0 0.0
    %345 = vmatprep.subr.mxu0 0.0
    %346 = vmatpush1.msra.mxu0 0.0
    %347 = vmatprep.subr.mxu0 0.0
    %348 = vmatpush1.msra.mxu0 0.0
    %349 = vmatprep.subr.mxu0 0.0
    %350 = vmatpush1.msra.mxu0 0.0
    %351 = vmatprep.subr.mxu0 0.0
    %352 = vmatpush1.msra.mxu0 0.0
    %353 = vmatprep.subr.mxu0 0.0
    %354 = vmatpush1.msra.mxu0 0.0
    %355 = vmatprep.subr.mxu0 0.0
    %356 = vmatpush1.msra.mxu0 0.0
    %357 = vmatprep.subr.mxu0 0.0
    %358 = vmatpush1.msra.mxu0 0.0
    %359 = vmatprep.subr.mxu0 0.0
    %360 = vmatpush1.msra.mxu0 0.0
    %361 = vmatprep.subr.mxu0 0.0
    %362 = vmatpush1.msra.mxu0 0.0
    %363 = vmatprep.subr.mxu0 0.0
    %364 = vmatpush1.msra.mxu0 0.0
    %365 = vmatprep.subr.mxu0 0.0
    %366 = vmatpush1.msra.mxu0 0.0
    %367 = vmatprep.subr.mxu0 0.0
    %368 = vmatpush1.msra.mxu0 0.0
    %369 = vmatprep.subr.mxu0 0.0
    %370 = vmatpush1.msra.mxu0 0.0
    %371 = vmatprep.subr.mxu0 0.0
    %372 = vmatpush1.msra.mxu0 0.0
    %373 = vmatprep.subr.mxu0 0.0
    %374 = vmatpush1.msra.mxu0 0.0
    %375 = vmatprep.subr.mxu0 0.0
    %376 = vmatpush1.msra.mxu0 0.0
    %377 = vmatprep.mubr.f32.mxu0 0.0
    %378 = vmatmul.mubr.f32.gmra.mrb[0].mxu0 %v311
    %v379 = vpop.f32.mrb[0].mxu0
    %v380 = vadd.f32 0.0, %v379
    %v381 = vpop.f32.mrb[0].mxu0
    %v382 = vadd.f32 0.0, %v381
    %383 = vdwg.mxu0
    %384 = vmatprep.subr.mxu0 %v294
    %385 = vmatpush1.msra.mxu0 %v295
    %386 = vmatprep.subr.mxu0 %v284
    %387 = vmatpush1.msra.mxu0 %v283
    %388 = vmatprep.subr.mxu0 %v309
    %389 = vmatpush1.msra.mxu0 %v306
    %390 = vmatprep.subr.mxu0 0.0
    %391 = vmatpush1.msra.mxu0 0.0
    %392 = vmatprep.subr.mxu0 0.0
    %393 = vmatpush1.msra.mxu0 0.0
    %394 = vmatprep.subr.mxu0 0.0
    %395 = vmatpush1.msra.mxu0 0.0
    %396 = vmatprep.subr.mxu0 0.0
    %397 = vmatpush1.msra.mxu0 0.0
    %398 = vmatprep.subr.mxu0 0.0
    %399 = vmatpush1.msra.mxu0 0.0
    %400 = vmatprep.subr.mxu0 0.0
    %401 = vmatpush1.msra.mxu0 0.0
    %402 = vmatprep.subr.mxu0 0.0
    %403 = vmatpush1.msra.mxu0 0.0
    %404 = vmatprep.subr.mxu0 0.0
    %405 = vmatpush1.msra.mxu0 0.0
    %406 = vmatprep.subr.mxu0 0.0
    %407 = vmatpush1.msra.mxu0 0.0
    %408 = vmatprep.subr.mxu0 0.0
    %409 = vmatpush1.msra.mxu0 0.0
    %410 = vmatprep.subr.mxu0 0.0
    %411 = vmatpush1.msra.mxu0 0.0
    %412 = vmatprep.subr.mxu0 0.0
    %413 = vmatpush1.msra.mxu0 0.0
    %414 = vmatprep.subr.mxu0 0.0
    %415 = vmatpush1.msra.mxu0 0.0
    %416 = vmatprep.subr.mxu0 0.0
    %417 = vmatpush1.msra.mxu0 0.0
    %418 = vmatprep.subr.mxu0 0.0
    %419 = vmatpush1.msra.mxu0 0.0
    %420 = vmatprep.subr.mxu0 0.0
    %421 = vmatpush1.msra.mxu0 0.0
    %422 = vmatprep.subr.mxu0 0.0
    %423 = vmatpush1.msra.mxu0 0.0
    %424 = vmatprep.subr.mxu0 0.0
    %425 = vmatpush1.msra.mxu0 0.0
    %426 = vmatprep.subr.mxu0 0.0
    %427 = vmatpush1.msra.mxu0 0.0
    %428 = vmatprep.subr.mxu0 0.0
    %429 = vmatpush1.msra.mxu0 0.0
    %430 = vmatprep.subr.mxu0 0.0
    %431 = vmatpush1.msra.mxu0 0.0
    %432 = vmatprep.subr.mxu0 0.0
    %433 = vmatpush1.msra.mxu0 0.0
    %434 = vmatprep.subr.mxu0 0.0
    %435 = vmatpush1.msra.mxu0 0.0
    %436 = vmatprep.subr.mxu0 0.0
    %437 = vmatpush1.msra.mxu0 0.0
    %438 = vmatprep.subr.mxu0 0.0
    %439 = vmatpush1.msra.mxu0 0.0
    %440 = vmatprep.subr.mxu0 0.0
    %441 = vmatpush1.msra.mxu0 0.0
    %442 = vmatprep.subr.mxu0 0.0
    %443 = vmatpush1.msra.mxu0 0.0
    %444 = vmatprep.subr.mxu0 0.0
    %445 = vmatpush1.msra.mxu0 0.0
    %446 = vmatprep.subr.mxu0 0.0
    %447 = vmatpush1.msra.mxu0 0.0
    %448 = vmatprep.mubr.f32.mxu0 0.0
    %449 = vmatmul.mubr.f32.gmra.mrb[0].mxu0 %v311
    %v450 = vpop.f32.mrb[0].mxu0
    %v451 = vadd.f32 0.0, %v450
    %v452 = vpop.f32.mrb[0].mxu0
    %v453 = vadd.f32 0.0, %v452
    %454 = vdwg.mxu0
    %vm455 = vcmp.gt.f32.partialorder %v380, 0.0
    %vm456 = vcmp.gt.f32.partialorder %v382, 0.0
    %vm457 = vcmp.gt.f32.partialorder %v451, 0.0
    %vm458 = vcmp.gt.f32.partialorder %v453, 0.0
    %v459 = vmul.f32 %v380, 0.01
    %v460 = vmul.f32 %v382, 0.01
    %v461 = vmul.f32 %v451, 0.01
    %v462 = vmul.f32 %v453, 0.01
    %v463 = vsel %vm455, %v380, %v459
    %v464 = vsel %vm456, %v382, %v460
    %v465 = vsel %vm457, %v451, %v461
    %v466 = vsel %vm458, %v453, %v462
    %v467 = vld [vmem:[#allocation8] sm:$0xff]
    %v468 = vld [vmem:[#allocation8 + $0x8] sm:$0xff]
    %v469 = vld [vmem:[#allocation8 + $0x10] sm:$0xff]
    %v470 = vld [vmem:[#allocation8 + $0x18] sm:$0xff]
    %v471 = vadd.f32 %v463, %v467
    %v472 = vadd.f32 %v464, %v468
    %v473 = vadd.f32 %v465, %v469
    %v474 = vadd.f32 %v466, %v470
    %475 = vst [vmem:[#allocation10] sm:$0xff] %v471
    %476 = vst [vmem:[#allocation10 + $0x8] sm:$0xff] %v472
    %477 = vst [vmem:[#allocation10 + $0x10] sm:$0xff] %v473
    %478 = vst [vmem:[#allocation10 + $0x18] sm:$0xff] %v474
    // Predicated region
    $region38: #{tpu_custom_call.1} parent=1 // pred_check
      _
    $region39: #{tpu_custom_call.1} parent=1 // pred_check_branch
      %480 = sbr.rel (0) target = $region41
    $region40: #{tpu_custom_call.1} parent=1 // pred_region
      %s482 = ssub.s32 512, 512
      %483 = vsyncadd [#allocation4], %s482
      %s485 = sshll.u32 [#allocation10], 4
      %s486 = int_to_ptr.vmem [resolvable:$true] %s485
      %488 = dma.vmem_to_hbm [thread:$0]  %s486, 512, %s5, [#allocation4]
    $region41: #{tpu_custom_call.1} parent=1 // pred_fallthru
      _
    // Predicated region
    $region42: #{tpu_custom_call.1} parent=1 // pred_check
      _
    $region43: #{tpu_custom_call.1} parent=1 // pred_check_branch
      %490 = sbr.rel (0) target = $region45
    $region44: #{tpu_custom_call.1} parent=1 // pred_region
      %491 = dma.done [#allocation4], 512
    $region45: #{tpu_custom_call.1} parent=1 // pred_fallthru
      _
    %492 = vsyncpa [#allocation3], 1
    %493 = vsyncpa [#allocation6], 1
    %494 = vsyncpa [#allocation9], 1
    %495 = vsyncpa [#allocation4], 1

</llo_original>
